<compile_context>
chip_gen: v7x
topology: tpu7x:2x2x1
jax: 0.10.0
libtpu: 0.0.40
codegen_flags: <defaults>
</compile_context>

<pallas_src>
import functools

import jax
import jax.numpy as jnp
from jax.experimental import pallas as pl
from jax.experimental.pallas import tpu as pltpu

H1, H2, H3 = 512, 256, 128  # hidden sizes from the module definition


def _round_up(n, m):
    return -(-n // m) * m


def decoder_kernel(x_ref, w1_ref, b1_ref, w2_ref, b2_ref, w3_ref, b3_ref, o_ref):
    # Fused 3x (Linear + ReLU); weights + one batch tile fit in VMEM.
    # Matmuls: bf16 x bf16 -> f32 accumulate on the MXU.
    # Bias-add / ReLU: f32 on the VPU; intermediates re-materialized as bf16
    # so the next matmul's LHS (and any VMEM spill) is half-width.
    h = jnp.dot(x_ref[...], w1_ref[...],
                preferred_element_type=jnp.float32) + b1_ref[...]
    h = jnp.maximum(h, 0.0).astype(jnp.bfloat16)
    h = jnp.dot(h, w2_ref[...],
                preferred_element_type=jnp.float32) + b2_ref[...]
    h = jnp.maximum(h, 0.0).astype(jnp.bfloat16)
    h = jnp.dot(h, w3_ref[...],
                preferred_element_type=jnp.float32) + b3_ref[...]
    # Single ReLU: the extra relu in the PyTorch forward() is idempotent.
    o_ref[...] = jnp.maximum(h, 0.0).astype(o_ref.dtype)


def _pick_bm(batch):
    """Batch-tile heuristic.

    * B <= 256: one grid step covering the whole (8-aligned) batch — too small
      to split usefully; avoids per-step pipeline overhead entirely.
    * 256 < B <= 2048: exactly two grid steps (bm = ceil(B/2) rounded to 8) so
      the 'parallel' grid axis keeps both v7x TensorCores busy while each step
      still amortizes the ~0.35 us/step pipeline overhead.
    * B > 2048: 1024-row tiles — large enough that MXU/DMA work per step
      dwarfs per-step overhead, small enough (~10 MiB working set with bf16
      activations) to sit comfortably inside scoped VMEM on every generation.
    """
    batch8 = _round_up(batch, 8)
    if batch8 <= 256:
        return batch8
    if batch8 <= 2048:
        return _round_up(pl.cdiv(batch8, 2), 8)
    return 1024


def prepare_params(w1, b1, w2, b2, w3, b3):
    """One-time weight cast to bf16 (do NOT re-cast per forward call)."""
    return (w1.astype(jnp.bfloat16), b1.astype(jnp.float32),
            w2.astype(jnp.bfloat16), b2.astype(jnp.float32),
            w3.astype(jnp.bfloat16), b3.astype(jnp.float32))


@functools.partial(jax.jit, static_argnames=("out_dtype",))
def decoder_forward(x, w1, b1, w2, b2, w3, b3, out_dtype=jnp.float32):
    B, L = x.shape
    bm = _pick_bm(B)
    grid = (pl.cdiv(B, bm),)  # ragged edge block handled by Pallas clipping

    # Cast the input once in the wrapper: halves x-tile DMA bytes and removes
    # the per-tile VPU cast.  Weights are expected pre-cast to bf16 (see
    # prepare_params); cast defensively only if the caller didn't.
    x = x.astype(jnp.bfloat16)
    if w1.dtype != jnp.bfloat16:
        w1, b1, w2, b2, w3, b3 = prepare_params(w1, b1, w2, b2, w3, b3)

    # Weight/bias index_maps are constant in the grid index, so Pallas does not
    # re-issue their HBM->VMEM DMA after the first grid step.
    full = lambda shape: pl.BlockSpec(shape, lambda i: (0,) * len(shape))

    out_bytes = jnp.dtype(out_dtype).itemsize
    flops = 2 * B * (L * H1 + H1 * H2 + H2 * H3)
    bytes_accessed = (
        2 * (L * H1 + H1 * H2 + H2 * H3)    # bf16 weights
        + 4 * (H1 + H2 + H3)                # f32 biases
        + 2 * B * L                         # bf16 input
        + out_bytes * B * H3                # output
    )

    return pl.pallas_call(
        decoder_kernel,
        out_shape=jax.ShapeDtypeStruct((B, H3), out_dtype),
        grid_spec=pltpu.PrefetchScalarGridSpec(
            num_scalar_prefetch=0,
            grid=grid,
            in_specs=[
                pl.BlockSpec((bm, L), lambda i: (i, 0)),   # x tile
                full((L, H1)), full((1, H1)),              # layer 1
                full((H1, H2)), full((1, H2)),             # layer 2
                full((H2, H3)), full((1, H3)),             # layer 3
            ],
            out_specs=pl.BlockSpec((bm, H3), lambda i: (i, 0)),
        ),
        compiler_params=pltpu.CompilerParams(
            dimension_semantics=("parallel",)),
        cost_estimate=pl.CostEstimate(
            flops=flops, transcendentals=0, bytes_accessed=bytes_accessed),
    )(x, w1, b1, w2, b2, w3, b3)


def init_params(key, block_length):
    """Deterministic synthetic init (PyTorch-style uniform fan_in bounds)."""
    ks = jax.random.split(key, 6)

    def linear(kw, kb, fan_in, fan_out):
        bound = 1.0 / jnp.sqrt(fan_in)
        # stored as [in, out] (transposed vs. torch's [out, in])
        w = jax.random.uniform(kw, (fan_in, fan_out), jnp.float32, -bound, bound)
        b = jax.random.uniform(kb, (1, fan_out), jnp.float32, -bound, bound)
        return w, b

    w1, b1 = linear(ks[0], ks[1], block_length, H1)
    w2, b2 = linear(ks[2], ks[3], H1, H2)
    w3, b3 = linear(ks[4], ks[5], H2, H3)
    return w1, b1, w2, b2, w3, b3


def _reference_bf16(x, w1, b1, w2, b2, w3, b3):
    """Same bf16-matmul / f32-accumulate / bf16-intermediate numerics."""
    def mm(a, w):
        return jnp.dot(a.astype(jnp.bfloat16), w.astype(jnp.bfloat16),
                       preferred_element_type=jnp.float32)
    h = jax.nn.relu(mm(x, w1) + b1).astype(jnp.bfloat16)
    h = jax.nn.relu(mm(h, w2) + b2).astype(jnp.bfloat16)
    return jax.nn.relu(mm(h, w3) + b3)


if __name__ == "__main__":
    block_length = 32
    batch = 8

    key = jax.random.PRNGKey(0)
    kx, kp = jax.random.split(key)
    x = jax.random.normal(kx, (batch, block_length), jnp.float32)
    params_f32 = init_params(kp, block_length)
    params = prepare_params(*params_f32)       # one-time bf16 weight cast

    out = decoder_forward(x, *params)
    jax.block_until_ready(out)
    assert out.shape == (batch, H3)
    assert out.dtype == jnp.float32

    ref = _reference_bf16(x, *params_f32)
    assert jnp.allclose(out, ref, atol=1e-3, rtol=1e-3), float(
        jnp.max(jnp.abs(out - ref)))

    # Loose sanity check against the full-f32 PyTorch-equivalent math
    # (bf16 matmul inputs introduce ~0.4% relative error).
    w1, b1, w2, b2, w3, b3 = params_f32
    ref32 = jax.nn.relu(x @ w1 + b1)
    ref32 = jax.nn.relu(ref32 @ w2 + b2)
    ref32 = jax.nn.relu(ref32 @ w3 + b3)
    assert jnp.allclose(out, ref32, atol=5e-2, rtol=5e-2), float(
        jnp.max(jnp.abs(out - ref32)))

    # Ragged-batch path (edge block clipped by Pallas, no pad/slice round-trip).
    xr = jax.random.normal(kx, (20, block_length), jnp.float32)
    out_r = decoder_forward(xr, *params)
    jax.block_until_ready(out_r)
    assert out_r.shape == (20, H3)
    ref_r = _reference_bf16(xr, *params_f32)
    assert jnp.allclose(out_r, ref_r, atol=1e-3, rtol=1e-3), float(
        jnp.max(jnp.abs(out_r - ref_r)))

    print("KERNEL_OK")
</pallas_src>

<mosaic_0001>
module attributes {stable_mosaic.version = 11 : i64} {
  func.func @decoder_kernel(%arg0: i32, %arg1: memref<8x32xbf16, #tpu.memory_space<vmem>>, %arg2: memref<32x512xbf16, #tpu.memory_space<vmem>>, %arg3: memref<1x512xf32, #tpu.memory_space<vmem>>, %arg4: memref<512x256xbf16, #tpu.memory_space<vmem>>, %arg5: memref<1x256xf32, #tpu.memory_space<vmem>>, %arg6: memref<256x128xbf16, #tpu.memory_space<vmem>>, %arg7: memref<1x128xf32, #tpu.memory_space<vmem>>, %arg8: memref<8x128xf32, #tpu.memory_space<vmem>>) attributes {dimension_semantics = [#tpu.dimension_semantics<parallel>], iteration_bounds = array<i64: 1>, scalar_prefetch = 0 : i64, scratch_operands = 0 : i64, tpu.core_type = #tpu.core_type<tc>, window_params = [{transform_indices = @transform_0, window_bounds = array<i64: 8, 32>}, {pipeline_mode = #tpu.pipeline_mode<synchronous>, transform_indices = @transform_1, window_bounds = array<i64: 32, 512>}, {pipeline_mode = #tpu.pipeline_mode<synchronous>, transform_indices = @transform_2, window_bounds = array<i64: 1, 512>}, {pipeline_mode = #tpu.pipeline_mode<synchronous>, transform_indices = @transform_3, window_bounds = array<i64: 512, 256>}, {pipeline_mode = #tpu.pipeline_mode<synchronous>, transform_indices = @transform_4, window_bounds = array<i64: 1, 256>}, {pipeline_mode = #tpu.pipeline_mode<synchronous>, transform_indices = @transform_5, window_bounds = array<i64: 256, 128>}, {pipeline_mode = #tpu.pipeline_mode<synchronous>, transform_indices = @transform_6, window_bounds = array<i64: 1, 128>}, {transform_indices = @transform_7, window_bounds = array<i64: 8, 128>}]} {
    %c0 = arith.constant 0 : index
    %c0_0 = arith.constant 0 : index
    %0 = vector.load %arg1[%c0, %c0_0] : memref<8x32xbf16, #tpu.memory_space<vmem>>, vector<8x32xbf16>
    %c0_1 = arith.constant 0 : index
    %c0_2 = arith.constant 0 : index
    %1 = vector.load %arg2[%c0_1, %c0_2] : memref<32x512xbf16, #tpu.memory_space<vmem>>, vector<32x512xbf16>
    %cst = arith.constant dense<0.000000e+00> : vector<8x512xf32>
    %2 = tpu.matmul %0, %1, %cst {dimension_numbers = #tpu.dot_dimension_numbers<[1], [0], [0], [1], [0, 0, 1, 1], [], []>} : vector<8x32xbf16>, vector<32x512xbf16>, vector<8x512xf32> -> vector<8x512xf32>
    %c0_3 = arith.constant 0 : index
    %c0_4 = arith.constant 0 : index
    %3 = vector.load %arg3[%c0_3, %c0_4] : memref<1x512xf32, #tpu.memory_space<vmem>>, vector<1x512xf32>
    %4 = vector.broadcast %3 : vector<1x512xf32> to vector<8x512xf32>
    %5 = arith.addf %2, %4 : vector<8x512xf32>
    %cst_5 = arith.constant 0.000000e+00 : f32
    %6 = vector.broadcast %cst_5 : f32 to vector<8x512xf32>
    %7 = arith.maximumf %5, %6 : vector<8x512xf32>
    %8 = arith.truncf %7 : vector<8x512xf32> to vector<8x512xbf16>
    %c0_6 = arith.constant 0 : index
    %c0_7 = arith.constant 0 : index
    %9 = vector.load %arg4[%c0_6, %c0_7] : memref<512x256xbf16, #tpu.memory_space<vmem>>, vector<512x256xbf16>
    %cst_8 = arith.constant dense<0.000000e+00> : vector<8x256xf32>
    %10 = tpu.matmul %8, %9, %cst_8 {dimension_numbers = #tpu.dot_dimension_numbers<[1], [0], [0], [1], [0, 0, 1, 1], [], []>} : vector<8x512xbf16>, vector<512x256xbf16>, vector<8x256xf32> -> vector<8x256xf32>
    %c0_9 = arith.constant 0 : index
    %c0_10 = arith.constant 0 : index
    %11 = vector.load %arg5[%c0_9, %c0_10] : memref<1x256xf32, #tpu.memory_space<vmem>>, vector<1x256xf32>
    %12 = vector.broadcast %11 : vector<1x256xf32> to vector<8x256xf32>
    %13 = arith.addf %10, %12 : vector<8x256xf32>
    %cst_11 = arith.constant 0.000000e+00 : f32
    %14 = vector.broadcast %cst_11 : f32 to vector<8x256xf32>
    %15 = arith.maximumf %13, %14 : vector<8x256xf32>
    %16 = arith.truncf %15 : vector<8x256xf32> to vector<8x256xbf16>
    %c0_12 = arith.constant 0 : index
    %c0_13 = arith.constant 0 : index
    %17 = vector.load %arg6[%c0_12, %c0_13] : memref<256x128xbf16, #tpu.memory_space<vmem>>, vector<256x128xbf16>
    %cst_14 = arith.constant dense<0.000000e+00> : vector<8x128xf32>
    %18 = tpu.matmul %16, %17, %cst_14 {dimension_numbers = #tpu.dot_dimension_numbers<[1], [0], [0], [1], [0, 0, 1, 1], [], []>} : vector<8x256xbf16>, vector<256x128xbf16>, vector<8x128xf32> -> vector<8x128xf32>
    %c0_15 = arith.constant 0 : index
    %c0_16 = arith.constant 0 : index
    %19 = vector.load %arg7[%c0_15, %c0_16] : memref<1x128xf32, #tpu.memory_space<vmem>>, vector<1x128xf32>
    %20 = vector.broadcast %19 : vector<1x128xf32> to vector<8x128xf32>
    %21 = arith.addf %18, %20 : vector<8x128xf32>
    %cst_17 = arith.constant 0.000000e+00 : f32
    %22 = vector.broadcast %cst_17 : f32 to vector<8x128xf32>
    %23 = arith.maximumf %21, %22 : vector<8x128xf32>
    %c0_18 = arith.constant 0 : index
    %c0_19 = arith.constant 0 : index
    %24 = vector.load %arg8[%c0_18, %c0_19] : memref<8x128xf32, #tpu.memory_space<vmem>>, vector<8x128xf32>
    tpu.vector_store %arg8[%c0_18, %c0_19], %23 {strides = array<i32>} : memref<8x128xf32, #tpu.memory_space<vmem>>, vector<8x128xf32>,
    return
  }
  func.func @transform_0(%arg0: i32) -> (i32, i32) {
    %c0_i32 = arith.constant 0 : i32
    %c0_i32_0 = arith.constant 0 : i32
    return %arg0, %c0_i32 : i32, i32
  }
  func.func @transform_1(%arg0: i32) -> (i32, i32) {
    %c0_i32 = arith.constant 0 : i32
    %c0_i32_0 = arith.constant 0 : i32
    %c0_i32_1 = arith.constant 0 : i32
    return %c0_i32, %c0_i32_0 : i32, i32
  }
  func.func @transform_2(%arg0: i32) -> (i32, i32) {
    %c0_i32 = arith.constant 0 : i32
    %c0_i32_0 = arith.constant 0 : i32
    %c0_i32_1 = arith.constant 0 : i32
    return %c0_i32, %c0_i32_0 : i32, i32
  }
  func.func @transform_3(%arg0: i32) -> (i32, i32) {
    %c0_i32 = arith.constant 0 : i32
    %c0_i32_0 = arith.constant 0 : i32
    %c0_i32_1 = arith.constant 0 : i32
    return %c0_i32, %c0_i32_0 : i32, i32
  }
  func.func @transform_4(%arg0: i32) -> (i32, i32) {
    %c0_i32 = arith.constant 0 : i32
    %c0_i32_0 = arith.constant 0 : i32
    %c0_i32_1 = arith.constant 0 : i32
    return %c0_i32, %c0_i32_0 : i32, i32
  }
  func.func @transform_5(%arg0: i32) -> (i32, i32) {
    %c0_i32 = arith.constant 0 : i32
    %c0_i32_0 = arith.constant 0 : i32
    %c0_i32_1 = arith.constant 0 : i32
    return %c0_i32, %c0_i32_0 : i32, i32
  }
  func.func @transform_6(%arg0: i32) -> (i32, i32) {
    %c0_i32 = arith.constant 0 : i32
    %c0_i32_0 = arith.constant 0 : i32
    %c0_i32_1 = arith.constant 0 : i32
    return %c0_i32, %c0_i32_0 : i32, i32
  }
  func.func @transform_7(%arg0: i32) -> (i32, i32) {
    %c0_i32 = arith.constant 0 : i32
    %c0_i32_0 = arith.constant 0 : i32
    return %arg0, %c0_i32 : i32, i32
  }
}

</mosaic_0001>

<llo_original>
// kernel: decoder_forward.1
$region0: #{decoder_forward.1}
  #allocation0 [shape = 'u32[]', space=smem, size = 0x4, offset = 0x4, fixed_abs, tag = 'smem constant byte address 0x4 - core index']
  #allocation1 [shape = 'u32[144,128]{1,0:T(1,128)}', space=vmem, size = 0x12000, scoped, tag = 'internal scratch']
  %s0 = inlined_call_operand.vmem [shape: bf16[8,32], index: 0, kind: input, shape index: {}]
  %s1 = inlined_call_operand.hbm [shape: bf16[32,512], index: 1, kind: input, shape index: {}]
  %s2 = inlined_call_operand.vmem [shape: f32[1,512], index: 2, kind: input, shape index: {}]
  %s3 = inlined_call_operand.hbm [shape: bf16[512,256], index: 3, kind: input, shape index: {}]
  %s4 = inlined_call_operand.vmem [shape: f32[1,256], index: 4, kind: input, shape index: {}]
  %s5 = inlined_call_operand.hbm [shape: bf16[256,128], index: 5, kind: input, shape index: {}]
  %s6 = inlined_call_operand.vmem [shape: f32[1,128], index: 6, kind: input, shape index: {}]
  %s7 = inlined_call_operand.hbm [shape: f32[8,128], index: 7, kind: output, shape index: {}]
  %s8 = sld [smem:[#allocation0]]
  $region50: #{decoder_forward.1} parent=0
    _
  %s10 = ssub.s32 1, %s8
  %s11 = scalar_select 0, %s10, %s8
  $region1: #{decoder_forward.1} parent=0
    #allocation2 [shape = 'u8[32768]{0}', space=vmem, size = 0x8000, scoped, tag = 'input window, operand 1, single buffered']
    #allocation3 [shape = 's32[1]{0}', space=sflag, size = 0x4, scoped, tag = 'scoped memory for decoder_forward.1']
    #allocation4 [shape = 's32[1]{0}', space=sflag, size = 0x4, scoped, tag = 'scoped memory for decoder_forward.1']
    #allocation5 [shape = 'u8[262144]{0}', space=vmem, size = 0x40000, scoped, tag = 'input window, operand 3, single buffered']
    #allocation6 [shape = 's32[1]{0}', space=sflag, size = 0x4, scoped, tag = 'scoped memory for decoder_forward.1']
    #allocation7 [shape = 'u8[65536]{0}', space=vmem, size = 0x10000, scoped, tag = 'input window, operand 5, single buffered']
    #allocation8 [shape = 'u8[4096]{0}', space=vmem, size = 0x1000, scoped, tag = 'output window, operand 0, single buffered']
    %12 = vsyncpa [#allocation3], 0
    %13 = vsyncpa [#allocation6], 0
    %14 = vsyncpa [#allocation4], 0
    // Predicated region
    $region2: #{decoder_forward.1} parent=1 // pred_check
      _
    $region3: #{decoder_forward.1} parent=1 // pred_check_branch
      %16 = sbr.rel (0) target = $region5
    $region4: #{decoder_forward.1} parent=1 // pred_region
      _
    $region5: #{decoder_forward.1} parent=1 // pred_fallthru
      _
    // Predicated region
    $region6: #{decoder_forward.1} parent=1 // pred_check
      _
    $region7: #{decoder_forward.1} parent=1 // pred_check_branch
      %18 = sbr.rel (0) target = $region9
    $region8: #{decoder_forward.1} parent=1 // pred_region
      %s20 = ssub.s32 1024, 1024
      %21 = vsyncadd [#allocation3], %s20
      %s22 = sshll.u32 [#allocation2], 4
      %s23 = int_to_ptr.vmem [resolvable:$true] %s22
      %28 = dma.hbm_to_vmem [thread:$0]  %s1, 1024, %s23, [#allocation3], 256, 256, 16
    $region9: #{decoder_forward.1} parent=1 // pred_fallthru
      _
    // Predicated region
    $region10: #{decoder_forward.1} parent=1 // pred_check
      _
    $region11: #{decoder_forward.1} parent=1 // pred_check_branch
      %30 = sbr.rel (0) target = $region13
    $region12: #{decoder_forward.1} parent=1 // pred_region
      _
    $region13: #{decoder_forward.1} parent=1 // pred_fallthru
      _
    // Predicated region
    $region14: #{decoder_forward.1} parent=1 // pred_check
      _
    $region15: #{decoder_forward.1} parent=1 // pred_check_branch
      %32 = sbr.rel (0) target = $region17
    $region16: #{decoder_forward.1} parent=1 // pred_region
      %s34 = ssub.s32 8192, 8192
      %35 = vsyncadd [#allocation6], %s34
      %s36 = sshll.u32 [#allocation5], 4
      %s37 = int_to_ptr.vmem [resolvable:$true] %s36
      %42 = dma.hbm_to_vmem [thread:$0]  %s3, 8192, %s37, [#allocation6], 128, 128, 8
    $region17: #{decoder_forward.1} parent=1 // pred_fallthru
      _
    // Predicated region
    $region18: #{decoder_forward.1} parent=1 // pred_check
      _
    $region19: #{decoder_forward.1} parent=1 // pred_check_branch
      %44 = sbr.rel (0) target = $region21
    $region20: #{decoder_forward.1} parent=1 // pred_region
      _
    $region21: #{decoder_forward.1} parent=1 // pred_fallthru
      _
    // Predicated region
    $region22: #{decoder_forward.1} parent=1 // pred_check
      _
    $region23: #{decoder_forward.1} parent=1 // pred_check_branch
      %46 = sbr.rel (0) target = $region25
    $region24: #{decoder_forward.1} parent=1 // pred_region
      %s48 = ssub.s32 2048, 2048
      %49 = vsyncadd [#allocation6], %s48
      %s50 = sshll.u32 [#allocation7], 4
      %s51 = int_to_ptr.vmem [resolvable:$true] %s50
      %56 = dma.hbm_to_vmem [thread:$0]  %s5, 2048, %s51, [#allocation6], 64, 64, 4
    $region25: #{decoder_forward.1} parent=1 // pred_fallthru
      _
    // Predicated region
    $region26: #{decoder_forward.1} parent=1 // pred_check
      _
    $region27: #{decoder_forward.1} parent=1 // pred_check_branch
      %58 = sbr.rel (0) target = $region29
    $region28: #{decoder_forward.1} parent=1 // pred_region
      _
    $region29: #{decoder_forward.1} parent=1 // pred_fallthru
      _
    // Predicated region
    $region30: #{decoder_forward.1} parent=1 // pred_check
      _
    $region31: #{decoder_forward.1} parent=1 // pred_check_branch
      %60 = sbr.rel (0) target = $region33
    $region32: #{decoder_forward.1} parent=1 // pred_region
      %61 = dma.done [#allocation3], 1024
    $region33: #{decoder_forward.1} parent=1 // pred_fallthru
      _
    // Predicated region
    $region34: #{decoder_forward.1} parent=1 // pred_check
      _
    $region35: #{decoder_forward.1} parent=1 // pred_check_branch
      %63 = sbr.rel (0) target = $region37
    $region36: #{decoder_forward.1} parent=1 // pred_region
      %64 = dma.done [#allocation6], 8192
    $region37: #{decoder_forward.1} parent=1 // pred_fallthru
      _
    // Predicated region
    $region38: #{decoder_forward.1} parent=1 // pred_check
      _
    $region39: #{decoder_forward.1} parent=1 // pred_check_branch
      %66 = sbr.rel (0) target = $region41
    $region40: #{decoder_forward.1} parent=1 // pred_region
      %67 = dma.done [#allocation6], 2048
    $region41: #{decoder_forward.1} parent=1 // pred_fallthru
      _
    %v69 = vld [vmem:[%s0] sm:$0xf]
    %v70 = vld [vmem:[#allocation2] sm:$0xff]
    %v71 = vld [vmem:[#allocation2 + $0x8] sm:$0xff]
    %v72 = vld [vmem:[#allocation2 + $0x10] sm:$0xff]
    %v73 = vld [vmem:[#allocation2 + $0x18] sm:$0xff]
    %v74 = vld [vmem:[#allocation2 + $0x20] sm:$0xff]
    %v75 = vld [vmem:[#allocation2 + $0x28] sm:$0xff]
    %v76 = vld [vmem:[#allocation2 + $0x30] sm:$0xff]
    %v77 = vld [vmem:[#allocation2 + $0x38] sm:$0xff]
    %v78 = vld [vmem:[%s2] sm:$0xf]
    %v80 = vlaneseq
    %v81 = vshrl.u32 %v80, 7
    %v82 = vsub.s32 0, %v81
    %v83 = vrot.slane %v78, %v82
    %v84 = vlaneseq
    %v85 = vshrl.u32 %v84, 7
    %v86 = vsub.s32 1, %v85
    %v87 = vrot.slane %v78, %v86
    %v88 = vlaneseq
    %v89 = vshrl.u32 %v88, 7
    %v90 = vsub.s32 2, %v89
    %v91 = vrot.slane %v78, %v90
    %v92 = vlaneseq
    %v93 = vshrl.u32 %v92, 7
    %v94 = vsub.s32 3, %v93
    %v95 = vrot.slane %v78, %v94
    %v108 = vunpack.c.l.b16 %v70
    %v109 = vunpack.c.h.b16 %v70
    %v110 = vunpack.c.l.b16 %v71
    %v111 = vunpack.c.h.b16 %v71
    %v112 = vunpack.c.l.b16 %v72
    %v113 = vunpack.c.h.b16 %v72
    %v114 = vunpack.c.l.b16 %v73
    %v115 = vunpack.c.h.b16 %v73
    %v116 = vunpack.c.l.b16 %v74
    %v117 = vunpack.c.h.b16 %v74
    %v118 = vunpack.c.l.b16 %v75
    %v119 = vunpack.c.h.b16 %v75
    %v120 = vunpack.c.l.b16 %v76
    %v121 = vunpack.c.h.b16 %v76
    %v122 = vunpack.c.l.b16 %v77
    %v123 = vunpack.c.h.b16 %v77
    %v124 = vpack.c.b16 %v112, %v108
    %v125 = vpack.c.b16 %v113, %v109
    %v126 = vpack.c.b16 %v114, %v110
    %v127 = vpack.c.b16 %v115, %v111
    %v128 = vpack.c.b16 %v120, %v116
    %v129 = vpack.c.b16 %v121, %v117
    %v130 = vpack.c.b16 %v122, %v118
    %v131 = vpack.c.b16 %v123, %v119
    %vm140 = vcmask 261120
    %v142 = vsel %vm140, %v69, 0
    %144 = vmatprep.subr.bf16.mxu0 %v125
    %145 = vmatpush1.bf16.msra.mxu0 %v124
    %146 = vmatprep.subr.bf16.mxu0 %v129
    %147 = vmatpush1.bf16.msra.mxu0 %v128
    %148 = vmatprep.subr.bf16.mxu0 0
    %149 = vmatpush1.bf16.msra.mxu0 0
    %150 = vmatprep.subr.bf16.mxu0 0
    %151 = vmatpush1.bf16.msra.mxu0 0
    %152 = vmatprep.subr.bf16.mxu0 0
    %153 = vmatpush1.bf16.msra.mxu0 0
    %154 = vmatprep.subr.bf16.mxu0 0
    %155 = vmatpush1.bf16.msra.mxu0 0
    %156 = vmatprep.subr.bf16.mxu0 0
    %157 = vmatpush1.bf16.msra.mxu0 0
    %158 = vmatprep.subr.bf16.mxu0 0
    %159 = vmatpush1.bf16.msra.mxu0 0
    %160 = vmatprep.subr.bf16.mxu0 0
    %161 = vmatpush1.bf16.msra.mxu0 0
    %162 = vmatprep.subr.bf16.mxu0 0
    %163 = vmatpush1.bf16.msra.mxu0 0
    %164 = vmatprep.subr.bf16.mxu0 0
    %165 = vmatpush1.bf16.msra.mxu0 0
    %166 = vmatprep.subr.bf16.mxu0 0
    %167 = vmatpush1.bf16.msra.mxu0 0
    %168 = vmatprep.subr.bf16.mxu0 0
    %169 = vmatpush1.bf16.msra.mxu0 0
    %170 = vmatprep.subr.bf16.mxu0 0
    %171 = vmatpush1.bf16.msra.mxu0 0
    %172 = vmatprep.subr.bf16.mxu0 0
    %173 = vmatpush1.bf16.msra.mxu0 0
    %174 = vmatprep.subr.bf16.mxu0 0
    %175 = vmatpush1.bf16.msra.mxu0 0
    %176 = vmatprep.mubr.bf16.mxu0 0
    %177 = vmatmul.mubr.bf16.gmra.mrb[0].mxu0 %v142
    %v178 = vpop.f32.mrb[0].mxu0
    %v179 = vadd.f32 %v83, %v178
    %v180 = vpop.f32.mrb[0].mxu0
    %v181 = vadd.f32 %v87, %v180
    %v182 = vpop.f32.mrb[0].mxu0
    %v183 = vpop.f32.mrb[0].mxu0
    %184 = vdwg.mxu0
    %185 = vmatprep.subr.bf16.mxu0 %v127
    %186 = vmatpush1.bf16.msra.mxu0 %v126
    %187 = vmatprep.subr.bf16.mxu0 %v131
    %188 = vmatpush1.bf16.msra.mxu0 %v130
    %189 = vmatprep.subr.bf16.mxu0 0
    %190 = vmatpush1.bf16.msra.mxu0 0
    %191 = vmatprep.subr.bf16.mxu0 0
    %192 = vmatpush1.bf16.msra.mxu0 0
    %193 = vmatprep.subr.bf16.mxu0 0
    %194 = vmatpush1.bf16.msra.mxu0 0
    %195 = vmatprep.subr.bf16.mxu0 0
    %196 = vmatpush1.bf16.msra.mxu0 0
    %197 = vmatprep.subr.bf16.mxu0 0
    %198 = vmatpush1.bf16.msra.mxu0 0
    %199 = vmatprep.subr.bf16.mxu0 0
    %200 = vmatpush1.bf16.msra.mxu0 0
    %201 = vmatprep.subr.bf16.mxu0 0
    %202 = vmatpush1.bf16.msra.mxu0 0
    %203 = vmatprep.subr.bf16.mxu0 0
    %204 = vmatpush1.bf16.msra.mxu0 0
    %205 = vmatprep.subr.bf16.mxu0 0
    %206 = vmatpush1.bf16.msra.mxu0 0
    %207 = vmatprep.subr.bf16.mxu0 0
    %208 = vmatpush1.bf16.msra.mxu0 0
    %209 = vmatprep.subr.bf16.mxu0 0
    %210 = vmatpush1.bf16.msra.mxu0 0
    %211 = vmatprep.subr.bf16.mxu0 0
    %212 = vmatpush1.bf16.msra.mxu0 0
    %213 = vmatprep.subr.bf16.mxu0 0
    %214 = vmatpush1.bf16.msra.mxu0 0
    %215 = vmatprep.subr.bf16.mxu0 0
    %216 = vmatpush1.bf16.msra.mxu0 0
    %217 = vmatprep.mubr.bf16.mxu0 0
    %218 = vmatmul.mubr.bf16.gmra.mrb[0].mxu0 %v142
    %v219 = vpop.f32.mrb[0].mxu0
    %v220 = vadd.f32 %v91, %v219
    %v221 = vpop.f32.mrb[0].mxu0
    %v222 = vadd.f32 %v95, %v221
    %v223 = vpop.f32.mrb[0].mxu0
    %v224 = vpop.f32.mrb[0].mxu0
    %225 = vdwg.mxu0
    %v226 = vmax.f32 %v179, 0.0
    %v227 = vmax.f32 %v181, 0.0
    %v228 = vmax.f32 %v220, 0.0
    %v229 = vmax.f32 %v222, 0.0
    %v230 = vpack.c.bf16 %v226, %v226
    %v231 = vpack.c.bf16 %v227, %v227
    %v232 = vpack.c.bf16 %v228, %v228
    %v233 = vpack.c.bf16 %v229, %v229
    %v234 = vld [vmem:[#allocation5] sm:$0xff]
    %v235 = vld [vmem:[#allocation5 + $0x8] sm:$0xff]
    %v236 = vld [vmem:[#allocation5 + $0x10] sm:$0xff]
    %v237 = vld [vmem:[#allocation5 + $0x18] sm:$0xff]
    %v238 = vld [vmem:[#allocation5 + $0x20] sm:$0xff]
    %v239 = vld [vmem:[#allocation5 + $0x28] sm:$0xff]
    %v240 = vld [vmem:[#allocation5 + $0x30] sm:$0xff]
    %v241 = vld [vmem:[#allocation5 + $0x38] sm:$0xff]
    %v242 = vld [vmem:[#allocation5 + $0x40] sm:$0xff]
    %v243 = vld [vmem:[#allocation5 + $0x48] sm:$0xff]
    %v244 = vld [vmem:[#allocation5 + $0x50] sm:$0xff]
    %v245 = vld [vmem:[#allocation5 + $0x58] sm:$0xff]
    %v246 = vld [vmem:[#allocation5 + $0x60] sm:$0xff]
    %v247 = vld [vmem:[#allocation5 + $0x68] sm:$0xff]
    %v248 = vld [vmem:[#allocation5 + $0x70] sm:$0xff]
    %v249 = vld [vmem:[#allocation5 + $0x78] sm:$0xff]
    %v250 = vld [vmem:[#allocation5 + $0x80] sm:$0xff]
    %v251 = vld [vmem:[#allocation5 + $0x88] sm:$0xff]
    %v252 = vld [vmem:[#allocation5 + $0x90] sm:$0xff]
    %v253 = vld [vmem:[#allocation5 + $0x98] sm:$0xff]
    %v254 = vld [vmem:[#allocation5 + $0xa0] sm:$0xff]
    %v255 = vld [vmem:[#allocation5 + $0xa8] sm:$0xff]
    %v256 = vld [vmem:[#allocation5 + $0xb0] sm:$0xff]
    %v257 = vld [vmem:[#allocation5 + $0xb8] sm:$0xff]
    %v258 = vld [vmem:[#allocation5 + $0xc0] sm:$0xff]
    %v259 = vld [vmem:[#allocation5 + $0xc8] sm:$0xff]
    %v260 = vld [vmem:[#allocation5 + $0xd0] sm:$0xff]
    %v261 = vld [vmem:[#allocation5 + $0xd8] sm:$0xff]
    %v262 = vld [vmem:[#allocation5 + $0xe0] sm:$0xff]
    %v263 = vld [vmem:[#allocation5 + $0xe8] sm:$0xff]
    %v264 = vld [vmem:[#allocation5 + $0xf0] sm:$0xff]
    %v265 = vld [vmem:[#allocation5 + $0xf8] sm:$0xff]
    %v266 = vld [vmem:[#allocation5 + $0x100] sm:$0xff]
    %v267 = vld [vmem:[#allocation5 + $0x108] sm:$0xff]
    %v268 = vld [vmem:[#allocation5 + $0x110] sm:$0xff]
    %v269 = vld [vmem:[#allocation5 + $0x118] sm:$0xff]
    %v270 = vld [vmem:[#allocation5 + $0x120] sm:$0xff]
    %v271 = vld [vmem:[#allocation5 + $0x128] sm:$0xff]
    %v272 = vld [vmem:[#allocation5 + $0x130] sm:$0xff]
    %v273 = vld [vmem:[#allocation5 + $0x138] sm:$0xff]
    %v274 = vld [vmem:[#allocation5 + $0x140] sm:$0xff]
    %v275 = vld [vmem:[#allocation5 + $0x148] sm:$0xff]
    %v276 = vld [vmem:[#allocation5 + $0x150] sm:$0xff]
    %v277 = vld [vmem:[#allocation5 + $0x158] sm:$0xff]
    %v278 = vld [vmem:[#allocation5 + $0x160] sm:$0xff]
    %v279 = vld [vmem:[#allocation5 + $0x168] sm:$0xff]
    %v280 = vld [vmem:[#allocation5 + $0x170] sm:$0xff]
    %v281 = vld [vmem:[#allocation5 + $0x178] sm:$0xff]
    %v282 = vld [vmem:[#allocation5 + $0x180] sm:$0xff]
    %v283 = vld [vmem:[#allocation5 + $0x188] sm:$0xff]
    %v284 = vld [vmem:[#allocation5 + $0x190] sm:$0xff]
    %v285 = vld [vmem:[#allocation5 + $0x198] sm:$0xff]
    %v286 = vld [vmem:[#allocation5 + $0x1a0] sm:$0xff]
    %v287 = vld [vmem:[#allocation5 + $0x1a8] sm:$0xff]
    %v288 = vld [vmem:[#allocation5 + $0x1b0] sm:$0xff]
    %v289 = vld [vmem:[#allocation5 + $0x1b8] sm:$0xff]
    %v290 = vld [vmem:[#allocation5 + $0x1c0] sm:$0xff]
    %v291 = vld [vmem:[#allocation5 + $0x1c8] sm:$0xff]
    %v292 = vld [vmem:[#allocation5 + $0x1d0] sm:$0xff]
    %v293 = vld [vmem:[#allocation5 + $0x1d8] sm:$0xff]
    %v294 = vld [vmem:[#allocation5 + $0x1e0] sm:$0xff]
    %v295 = vld [vmem:[#allocation5 + $0x1e8] sm:$0xff]
    %v296 = vld [vmem:[#allocation5 + $0x1f0] sm:$0xff]
    %v297 = vld [vmem:[#allocation5 + $0x1f8] sm:$0xff]
    %v298 = vld [vmem:[%s4] sm:$0x3]
    %v300 = vlaneseq
    %v301 = vshrl.u32 %v300, 7
    %v302 = vsub.s32 0, %v301
    %v303 = vrot.slane %v298, %v302
    %v304 = vlaneseq
    %v305 = vshrl.u32 %v304, 7
    %v306 = vsub.s32 1, %v305
    %v307 = vrot.slane %v298, %v306
    %v374 = vunpack.c.l.b16 %v234
    %v375 = vunpack.c.h.b16 %v234
    %v376 = vunpack.c.l.b16 %v235
    %v377 = vunpack.c.h.b16 %v235
    %v378 = vunpack.c.l.b16 %v236
    %v379 = vunpack.c.h.b16 %v236
    %v380 = vunpack.c.l.b16 %v237
    %v381 = vunpack.c.h.b16 %v237
    %v382 = vunpack.c.l.b16 %v238
    %v383 = vunpack.c.h.b16 %v238
    %v384 = vunpack.c.l.b16 %v239
    %v385 = vunpack.c.h.b16 %v239
    %v386 = vunpack.c.l.b16 %v240
    %v387 = vunpack.c.h.b16 %v240
    %v388 = vunpack.c.l.b16 %v241
    %v389 = vunpack.c.h.b16 %v241
    %v390 = vunpack.c.l.b16 %v242
    %v391 = vunpack.c.h.b16 %v242
    %v392 = vunpack.c.l.b16 %v243
    %v393 = vunpack.c.h.b16 %v243
    %v394 = vunpack.c.l.b16 %v244
    %v395 = vunpack.c.h.b16 %v244
    %v396 = vunpack.c.l.b16 %v245
    %v397 = vunpack.c.h.b16 %v245
    %v398 = vunpack.c.l.b16 %v246
    %v399 = vunpack.c.h.b16 %v246
    %v400 = vunpack.c.l.b16 %v247
    %v401 = vunpack.c.h.b16 %v247
    %v402 = vunpack.c.l.b16 %v248
    %v403 = vunpack.c.h.b16 %v248
    %v404 = vunpack.c.l.b16 %v249
    %v405 = vunpack.c.h.b16 %v249
    %v406 = vunpack.c.l.b16 %v250
    %v407 = vunpack.c.h.b16 %v250
    %v408 = vunpack.c.l.b16 %v251
    %v409 = vunpack.c.h.b16 %v251
    %v410 = vunpack.c.l.b16 %v252
    %v411 = vunpack.c.h.b16 %v252
    %v412 = vunpack.c.l.b16 %v253
    %v413 = vunpack.c.h.b16 %v253
    %v414 = vunpack.c.l.b16 %v254
    %v415 = vunpack.c.h.b16 %v254
    %v416 = vunpack.c.l.b16 %v255
    %v417 = vunpack.c.h.b16 %v255
    %v418 = vunpack.c.l.b16 %v256
    %v419 = vunpack.c.h.b16 %v256
    %v420 = vunpack.c.l.b16 %v257
    %v421 = vunpack.c.h.b16 %v257
    %v422 = vunpack.c.l.b16 %v258
    %v423 = vunpack.c.h.b16 %v258
    %v424 = vunpack.c.l.b16 %v259
    %v425 = vunpack.c.h.b16 %v259
    %v426 = vunpack.c.l.b16 %v260
    %v427 = vunpack.c.h.b16 %v260
    %v428 = vunpack.c.l.b16 %v261
    %v429 = vunpack.c.h.b16 %v261
    %v430 = vunpack.c.l.b16 %v262
    %v431 = vunpack.c.h.b16 %v262
    %v432 = vunpack.c.l.b16 %v263
    %v433 = vunpack.c.h.b16 %v263
    %v434 = vunpack.c.l.b16 %v264
    %v435 = vunpack.c.h.b16 %v264
    %v436 = vunpack.c.l.b16 %v265
    %v437 = vunpack.c.h.b16 %v265
    %v438 = vunpack.c.l.b16 %v266
    %v439 = vunpack.c.h.b16 %v266
    %v440 = vunpack.c.l.b16 %v267
    %v441 = vunpack.c.h.b16 %v267
    %v442 = vunpack.c.l.b16 %v268
    %v443 = vunpack.c.h.b16 %v268
    %v444 = vunpack.c.l.b16 %v269
    %v445 = vunpack.c.h.b16 %v269
    %v446 = vunpack.c.l.b16 %v270
    %v447 = vunpack.c.h.b16 %v270
    %v448 = vunpack.c.l.b16 %v271
    %v449 = vunpack.c.h.b16 %v271
    %v450 = vunpack.c.l.b16 %v272
    %v451 = vunpack.c.h.b16 %v272
    %v452 = vunpack.c.l.b16 %v273
    %v453 = vunpack.c.h.b16 %v273
    %v454 = vunpack.c.l.b16 %v274
    %v455 = vunpack.c.h.b16 %v274
    %v456 = vunpack.c.l.b16 %v275
    %v457 = vunpack.c.h.b16 %v275
    %v458 = vunpack.c.l.b16 %v276
    %v459 = vunpack.c.h.b16 %v276
    %v460 = vunpack.c.l.b16 %v277
    %v461 = vunpack.c.h.b16 %v277
    %v462 = vunpack.c.l.b16 %v278
    %v463 = vunpack.c.h.b16 %v278
    %v464 = vunpack.c.l.b16 %v279
    %v465 = vunpack.c.h.b16 %v279
    %v466 = vunpack.c.l.b16 %v280
    %v467 = vunpack.c.h.b16 %v280
    %v468 = vunpack.c.l.b16 %v281
    %v469 = vunpack.c.h.b16 %v281
    %v470 = vunpack.c.l.b16 %v282
    %v471 = vunpack.c.h.b16 %v282
    %v472 = vunpack.c.l.b16 %v283
    %v473 = vunpack.c.h.b16 %v283
    %v474 = vunpack.c.l.b16 %v284
    %v475 = vunpack.c.h.b16 %v284
    %v476 = vunpack.c.l.b16 %v285
    %v477 = vunpack.c.h.b16 %v285
    %v478 = vunpack.c.l.b16 %v286
    %v479 = vunpack.c.h.b16 %v286
    %v480 = vunpack.c.l.b16 %v287
    %v481 = vunpack.c.h.b16 %v287
    %v482 = vunpack.c.l.b16 %v288
    %v483 = vunpack.c.h.b16 %v288
    %v484 = vunpack.c.l.b16 %v289
    %v485 = vunpack.c.h.b16 %v289
    %v486 = vunpack.c.l.b16 %v290
    %v487 = vunpack.c.h.b16 %v290
    %v488 = vunpack.c.l.b16 %v291
    %v489 = vunpack.c.h.b16 %v291
    %v490 = vunpack.c.l.b16 %v292
    %v491 = vunpack.c.h.b16 %v292
    %v492 = vunpack.c.l.b16 %v293
    %v493 = vunpack.c.h.b16 %v293
    %v494 = vunpack.c.l.b16 %v294
    %v495 = vunpack.c.h.b16 %v294
    %v496 = vunpack.c.l.b16 %v295
    %v497 = vunpack.c.h.b16 %v295
    %v498 = vunpack.c.l.b16 %v296
    %v499 = vunpack.c.h.b16 %v296
    %v500 = vunpack.c.l.b16 %v297
    %v501 = vunpack.c.h.b16 %v297
    %v502 = vpack.c.b16 %v376, %v374
    %v503 = vpack.c.b16 %v377, %v375
    %v504 = vpack.c.b16 %v380, %v378
    %v505 = vpack.c.b16 %v381, %v379
    %v506 = vpack.c.b16 %v384, %v382
    %v507 = vpack.c.b16 %v385, %v383
    %v508 = vpack.c.b16 %v388, %v386
    %v509 = vpack.c.b16 %v389, %v387
    %v510 = vpack.c.b16 %v392, %v390
    %v511 = vpack.c.b16 %v393, %v391
    %v512 = vpack.c.b16 %v396, %v394
    %v513 = vpack.c.b16 %v397, %v395
    %v514 = vpack.c.b16 %v400, %v398
    %v515 = vpack.c.b16 %v401, %v399
    %v516 = vpack.c.b16 %v404, %v402
    %v517 = vpack.c.b16 %v405, %v403
    %v518 = vpack.c.b16 %v408, %v406
    %v519 = vpack.c.b16 %v409, %v407
    %v520 = vpack.c.b16 %v412, %v410
    %v521 = vpack.c.b16 %v413, %v411
    %v522 = vpack.c.b16 %v416, %v414
    %v523 = vpack.c.b16 %v417, %v415
    %v524 = vpack.c.b16 %v420, %v418
    %v525 = vpack.c.b16 %v421, %v419
    %v526 = vpack.c.b16 %v424, %v422
    %v527 = vpack.c.b16 %v425, %v423
    %v528 = vpack.c.b16 %v428, %v426
    %v529 = vpack.c.b16 %v429, %v427
    %v530 = vpack.c.b16 %v432, %v430
    %v531 = vpack.c.b16 %v433, %v431
    %v532 = vpack.c.b16 %v436, %v434
    %v533 = vpack.c.b16 %v437, %v435
    %v534 = vpack.c.b16 %v440, %v438
    %v535 = vpack.c.b16 %v441, %v439
    %v536 = vpack.c.b16 %v444, %v442
    %v537 = vpack.c.b16 %v445, %v443
    %v538 = vpack.c.b16 %v448, %v446
    %v539 = vpack.c.b16 %v449, %v447
    %v540 = vpack.c.b16 %v452, %v450
    %v541 = vpack.c.b16 %v453, %v451
    %v542 = vpack.c.b16 %v456, %v454
    %v543 = vpack.c.b16 %v457, %v455
    %v544 = vpack.c.b16 %v460, %v458
    %v545 = vpack.c.b16 %v461, %v459
    %v546 = vpack.c.b16 %v464, %v462
    %v547 = vpack.c.b16 %v465, %v463
    %v548 = vpack.c.b16 %v468, %v466
    %v549 = vpack.c.b16 %v469, %v467
    %v550 = vpack.c.b16 %v472, %v470
    %v551 = vpack.c.b16 %v473, %v471
    %v552 = vpack.c.b16 %v476, %v474
    %v553 = vpack.c.b16 %v477, %v475
    %v554 = vpack.c.b16 %v480, %v478
    %v555 = vpack.c.b16 %v481, %v479
    %v556 = vpack.c.b16 %v484, %v482
    %v557 = vpack.c.b16 %v485, %v483
    %v558 = vpack.c.b16 %v488, %v486
    %v559 = vpack.c.b16 %v489, %v487
    %v560 = vpack.c.b16 %v492, %v490
    %v561 = vpack.c.b16 %v493, %v491
    %v562 = vpack.c.b16 %v496, %v494
    %v563 = vpack.c.b16 %v497, %v495
    %v564 = vpack.c.b16 %v500, %v498
    %v565 = vpack.c.b16 %v501, %v499
    %630 = vmatprep.subr.bf16.mxu0 %v503
    %631 = vmatpush1.bf16.msra.mxu0 %v502
    %632 = vmatprep.subr.bf16.mxu0 %v505
    %633 = vmatpush1.bf16.msra.mxu0 %v504
    %634 = vmatprep.subr.bf16.mxu0 %v507
    %635 = vmatpush1.bf16.msra.mxu0 %v506
    %636 = vmatprep.subr.bf16.mxu0 %v509
    %637 = vmatpush1.bf16.msra.mxu0 %v508
    %638 = vmatprep.subr.bf16.mxu0 %v511
    %639 = vmatpush1.bf16.msra.mxu0 %v510
    %640 = vmatprep.subr.bf16.mxu0 %v513
    %641 = vmatpush1.bf16.msra.mxu0 %v512
    %642 = vmatprep.subr.bf16.mxu0 %v515
    %643 = vmatpush1.bf16.msra.mxu0 %v514
    %644 = vmatprep.subr.bf16.mxu0 %v517
    %645 = vmatpush1.bf16.msra.mxu0 %v516
    %646 = vmatprep.subr.bf16.mxu0 %v519
    %647 = vmatpush1.bf16.msra.mxu0 %v518
    %648 = vmatprep.subr.bf16.mxu0 %v521
    %649 = vmatpush1.bf16.msra.mxu0 %v520
    %650 = vmatprep.subr.bf16.mxu0 %v523
    %651 = vmatpush1.bf16.msra.mxu0 %v522
    %652 = vmatprep.subr.bf16.mxu0 %v525
    %653 = vmatpush1.bf16.msra.mxu0 %v524
    %654 = vmatprep.subr.bf16.mxu0 %v527
    %655 = vmatpush1.bf16.msra.mxu0 %v526
    %656 = vmatprep.subr.bf16.mxu0 %v529
    %657 = vmatpush1.bf16.msra.mxu0 %v528
    %658 = vmatprep.subr.bf16.mxu0 %v531
    %659 = vmatpush1.bf16.msra.mxu0 %v530
    %660 = vmatprep.subr.bf16.mxu0 %v533
    %661 = vmatpush1.bf16.msra.mxu0 %v532
    %662 = vmatprep.mubr.bf16.mxu0 %v231
    %663 = vmatmul.mubr.bf16.gmra.mrb[0].mxu0 %v230
    %v664 = vpop.f32.mrb[0].mxu0
    %v665 = vadd.f32 %v303, %v664
    %v666 = vpop.f32.mrb[0].mxu0
    %v667 = vadd.f32 %v307, %v666
    %v668 = vpop.f32.mrb[0].mxu0
    %v669 = vpop.f32.mrb[0].mxu0
    %670 = vdwg.mxu0
    %671 = vmatprep.subr.bf16.mxu0 %v535
    %672 = vmatpush1.bf16.msra.mxu0 %v534
    %673 = vmatprep.subr.bf16.mxu0 %v537
    %674 = vmatpush1.bf16.msra.mxu0 %v536
    %675 = vmatprep.subr.bf16.mxu0 %v539
    %676 = vmatpush1.bf16.msra.mxu0 %v538
    %677 = vmatprep.subr.bf16.mxu0 %v541
    %678 = vmatpush1.bf16.msra.mxu0 %v540
    %679 = vmatprep.subr.bf16.mxu0 %v543
    %680 = vmatpush1.bf16.msra.mxu0 %v542
    %681 = vmatprep.subr.bf16.mxu0 %v545
    %682 = vmatpush1.bf16.msra.mxu0 %v544
    %683 = vmatprep.subr.bf16.mxu0 %v547
    %684 = vmatpush1.bf16.msra.mxu0 %v546
    %685 = vmatprep.subr.bf16.mxu0 %v549
    %686 = vmatpush1.bf16.msra.mxu0 %v548
    %687 = vmatprep.subr.bf16.mxu0 %v551
    %688 = vmatpush1.bf16.msra.mxu0 %v550
    %689 = vmatprep.subr.bf16.mxu0 %v553
    %690 = vmatpush1.bf16.msra.mxu0 %v552
    %691 = vmatprep.subr.bf16.mxu0 %v555
    %692 = vmatpush1.bf16.msra.mxu0 %v554
    %693 = vmatprep.subr.bf16.mxu0 %v557
    %694 = vmatpush1.bf16.msra.mxu0 %v556
    %695 = vmatprep.subr.bf16.mxu0 %v559
    %696 = vmatpush1.bf16.msra.mxu0 %v558
    %697 = vmatprep.subr.bf16.mxu0 %v561
    %698 = vmatpush1.bf16.msra.mxu0 %v560
    %699 = vmatprep.subr.bf16.mxu0 %v563
    %700 = vmatpush1.bf16.msra.mxu0 %v562
    %701 = vmatprep.subr.bf16.mxu0 %v565
    %702 = vmatpush1.bf16.msra.mxu0 %v564
    %703 = vmatprep.mubr.bf16.mxu0 %v233
    %704 = vmatmul.mubr.bf16.gmra.mrb[0].mxu0 %v232
    %v705 = vpop.f32.mrb[0].mxu0
    %v706 = vadd.f32 %v665, %v705
    %v707 = vpop.f32.mrb[0].mxu0
    %v708 = vadd.f32 %v667, %v707
    %v709 = vpop.f32.mrb[0].mxu0
    %v710 = vpop.f32.mrb[0].mxu0
    %711 = vdwg.mxu0
    %v712 = vmax.f32 %v706, 0.0
    %v713 = vmax.f32 %v708, 0.0
    %v714 = vpack.c.bf16 %v712, %v712
    %v715 = vpack.c.bf16 %v713, %v713
    %v716 = vld [vmem:[#allocation7] sm:$0xf]
    %v717 = vld [vmem:[#allocation7 + $0x4] sm:$0xf]
    %v718 = vld [vmem:[#allocation7 + $0x8] sm:$0xf]
    %v719 = vld [vmem:[#allocation7 + $0xc] sm:$0xf]
    %v720 = vld [vmem:[#allocation7 + $0x10] sm:$0xf]
    %v721 = vld [vmem:[#allocation7 + $0x14] sm:$0xf]
    %v722 = vld [vmem:[#allocation7 + $0x18] sm:$0xf]
    %v723 = vld [vmem:[#allocation7 + $0x1c] sm:$0xf]
    %v724 = vld [vmem:[#allocation7 + $0x20] sm:$0xf]
    %v725 = vld [vmem:[#allocation7 + $0x24] sm:$0xf]
    %v726 = vld [vmem:[#allocation7 + $0x28] sm:$0xf]
    %v727 = vld [vmem:[#allocation7 + $0x2c] sm:$0xf]
    %v728 = vld [vmem:[#allocation7 + $0x30] sm:$0xf]
    %v729 = vld [vmem:[#allocation7 + $0x34] sm:$0xf]
    %v730 = vld [vmem:[#allocation7 + $0x38] sm:$0xf]
    %v731 = vld [vmem:[#allocation7 + $0x3c] sm:$0xf]
    %v732 = vld [vmem:[#allocation7 + $0x40] sm:$0xf]
    %v733 = vld [vmem:[#allocation7 + $0x44] sm:$0xf]
    %v734 = vld [vmem:[#allocation7 + $0x48] sm:$0xf]
    %v735 = vld [vmem:[#allocation7 + $0x4c] sm:$0xf]
    %v736 = vld [vmem:[#allocation7 + $0x50] sm:$0xf]
    %v737 = vld [vmem:[#allocation7 + $0x54] sm:$0xf]
    %v738 = vld [vmem:[#allocation7 + $0x58] sm:$0xf]
    %v739 = vld [vmem:[#allocation7 + $0x5c] sm:$0xf]
    %v740 = vld [vmem:[#allocation7 + $0x60] sm:$0xf]
    %v741 = vld [vmem:[#allocation7 + $0x64] sm:$0xf]
    %v742 = vld [vmem:[#allocation7 + $0x68] sm:$0xf]
    %v743 = vld [vmem:[#allocation7 + $0x6c] sm:$0xf]
    %v744 = vld [vmem:[#allocation7 + $0x70] sm:$0xf]
    %v745 = vld [vmem:[#allocation7 + $0x74] sm:$0xf]
    %v746 = vld [vmem:[#allocation7 + $0x78] sm:$0xf]
    %v747 = vld [vmem:[#allocation7 + $0x7c] sm:$0xf]
    %v748 = vld [vmem:[%s6] sm:$0x1]
    %v750 = vlaneseq
    %v751 = vshrl.u32 %v750, 7
    %v752 = vsub.s32 0, %v751
    %v753 = vrot.slane %v748, %v752
    %v787 = vunpack.c.l.b16 %v716
    %v788 = vunpack.c.l.b16 %v717
    %v789 = vunpack.c.l.b16 %v718
    %v790 = vunpack.c.l.b16 %v719
    %v791 = vunpack.c.l.b16 %v720
    %v792 = vunpack.c.l.b16 %v721
    %v793 = vunpack.c.l.b16 %v722
    %v794 = vunpack.c.l.b16 %v723
    %v795 = vunpack.c.l.b16 %v724
    %v796 = vunpack.c.l.b16 %v725
    %v797 = vunpack.c.l.b16 %v726
    %v798 = vunpack.c.l.b16 %v727
    %v799 = vunpack.c.l.b16 %v728
    %v800 = vunpack.c.l.b16 %v729
    %v801 = vunpack.c.l.b16 %v730
    %v802 = vunpack.c.l.b16 %v731
    %v803 = vunpack.c.l.b16 %v732
    %v804 = vunpack.c.l.b16 %v733
    %v805 = vunpack.c.l.b16 %v734
    %v806 = vunpack.c.l.b16 %v735
    %v807 = vunpack.c.l.b16 %v736
    %v808 = vunpack.c.l.b16 %v737
    %v809 = vunpack.c.l.b16 %v738
    %v810 = vunpack.c.l.b16 %v739
    %v811 = vunpack.c.l.b16 %v740
    %v812 = vunpack.c.l.b16 %v741
    %v813 = vunpack.c.l.b16 %v742
    %v814 = vunpack.c.l.b16 %v743
    %v815 = vunpack.c.l.b16 %v744
    %v816 = vunpack.c.l.b16 %v745
    %v817 = vunpack.c.l.b16 %v746
    %v818 = vunpack.c.l.b16 %v747
    %v819 = vpack.c.b16 %v788, %v787
    %v820 = vpack.c.b16 %v790, %v789
    %v821 = vpack.c.b16 %v792, %v791
    %v822 = vpack.c.b16 %v794, %v793
    %v823 = vpack.c.b16 %v796, %v795
    %v824 = vpack.c.b16 %v798, %v797
    %v825 = vpack.c.b16 %v800, %v799
    %v826 = vpack.c.b16 %v802, %v801
    %v827 = vpack.c.b16 %v804, %v803
    %v828 = vpack.c.b16 %v806, %v805
    %v829 = vpack.c.b16 %v808, %v807
    %v830 = vpack.c.b16 %v810, %v809
    %v831 = vpack.c.b16 %v812, %v811
    %v832 = vpack.c.b16 %v814, %v813
    %v833 = vpack.c.b16 %v816, %v815
    %v834 = vpack.c.b16 %v818, %v817
    %851 = vmatprep.subr.bf16.mxu0 0
    %852 = vmatpush1.bf16.msra.mxu0 %v819
    %853 = vmatprep.subr.bf16.mxu0 0
    %854 = vmatpush1.bf16.msra.mxu0 %v820
    %855 = vmatprep.subr.bf16.mxu0 0
    %856 = vmatpush1.bf16.msra.mxu0 %v821
    %857 = vmatprep.subr.bf16.mxu0 0
    %858 = vmatpush1.bf16.msra.mxu0 %v822
    %859 = vmatprep.subr.bf16.mxu0 0
    %860 = vmatpush1.bf16.msra.mxu0 %v823
    %861 = vmatprep.subr.bf16.mxu0 0
    %862 = vmatpush1.bf16.msra.mxu0 %v824
    %863 = vmatprep.subr.bf16.mxu0 0
    %864 = vmatpush1.bf16.msra.mxu0 %v825
    %865 = vmatprep.subr.bf16.mxu0 0
    %866 = vmatpush1.bf16.msra.mxu0 %v826
    %867 = vmatprep.subr.bf16.mxu0 0
    %868 = vmatpush1.bf16.msra.mxu0 %v827
    %869 = vmatprep.subr.bf16.mxu0 0
    %870 = vmatpush1.bf16.msra.mxu0 %v828
    %871 = vmatprep.subr.bf16.mxu0 0
    %872 = vmatpush1.bf16.msra.mxu0 %v829
    %873 = vmatprep.subr.bf16.mxu0 0
    %874 = vmatpush1.bf16.msra.mxu0 %v830
    %875 = vmatprep.subr.bf16.mxu0 0
    %876 = vmatpush1.bf16.msra.mxu0 %v831
    %877 = vmatprep.subr.bf16.mxu0 0
    %878 = vmatpush1.bf16.msra.mxu0 %v832
    %879 = vmatprep.subr.bf16.mxu0 0
    %880 = vmatpush1.bf16.msra.mxu0 %v833
    %881 = vmatprep.subr.bf16.mxu0 0
    %882 = vmatpush1.bf16.msra.mxu0 %v834
    %883 = vmatprep.mubr.bf16.mxu0 %v715
    %884 = vmatmul.mubr.bf16.gmra.mrb[0].mxu0 %v714
    %v885 = vpop.f32.mrb[0].mxu0
    %v886 = vadd.f32 %v753, %v885
    %v887 = vpop.f32.mrb[0].mxu0
    %v888 = vpop.f32.mrb[0].mxu0
    %v889 = vpop.f32.mrb[0].mxu0
    %890 = vdwg.mxu0
    %v891 = vmax.f32 %v886, 0.0
    %892 = vst [vmem:[#allocation8] sm:$0xff] %v891
    // Predicated region
    $region42: #{decoder_forward.1} parent=1 // pred_check
      _
    $region43: #{decoder_forward.1} parent=1 // pred_check_branch
      %894 = sbr.rel (0) target = $region45
    $region44: #{decoder_forward.1} parent=1 // pred_region
      %s896 = ssub.s32 128, 128
      %897 = vsyncadd [#allocation4], %s896
      %s899 = sshll.u32 [#allocation8], 4
      %s900 = int_to_ptr.vmem [resolvable:$true] %s899
      %902 = dma.vmem_to_hbm [thread:$0]  %s900, 128, %s7, [#allocation4]
    $region45: #{decoder_forward.1} parent=1 // pred_fallthru
      _
    // Predicated region
    $region46: #{decoder_forward.1} parent=1 // pred_check
      _
    $region47: #{decoder_forward.1} parent=1 // pred_check_branch
      %904 = sbr.rel (0) target = $region49
    $region48: #{decoder_forward.1} parent=1 // pred_region
      %905 = dma.done [#allocation4], 128
    $region49: #{decoder_forward.1} parent=1 // pred_fallthru
      _
    %906 = vsyncpa [#allocation3], 1
    %907 = vsyncpa [#allocation6], 1
    %908 = vsyncpa [#allocation4], 1

</llo_original>
